<compile_context>
chip_gen: v6e
topology: v6e:2x2x1
jax: 0.10.0
libtpu: 0.0.40
codegen_flags: <defaults>
</compile_context>

<pallas_src>
import functools

import jax
import jax.numpy as jnp
from jax.experimental import pallas as pl
from jax.experimental.pallas import tpu as pltpu

_LANES = 128
_TILE_ROWS = 512  # 512x128 f32 = 256 KiB per operand tile; double-buffers easily


def _rmse_kernel(x_ref, y_ref, o_ref, acc_ref, *, inv_n, eps):
    """Accumulate sum((x - y)^2) across grid steps; finalize sqrt(mean + eps)."""
    step = pl.program_id(0)

    @pl.when(step == 0)
    def _():
        acc_ref[...] = jnp.zeros_like(acc_ref)

    d = x_ref[...] - y_ref[...]
    acc_ref[...] += jnp.sum(d * d, keepdims=True)  # (1, 1) partial sum

    @pl.when(step == pl.num_programs(0) - 1)
    def _():
        o_ref[...] = jnp.sqrt(acc_ref[...] * inv_n + eps)


def rmse_loss(yhat, y, eps=1e-6):
    """Forward pass of RMSELoss. Returns a scalar f32."""
    assert yhat.shape == y.shape, "yhat and y must have the same shape"
    n = yhat.size
    flat_x = yhat.reshape(-1).astype(jnp.float32)
    flat_y = y.reshape(-1).astype(jnp.float32)

    # Pad both operands with zeros up to a whole number of (TILE_ROWS, 128)
    # tiles; zero-padded slots have diff == 0 and are inert in the reduction.
    tile_elems = _TILE_ROWS * _LANES
    padded = pl.cdiv(n, tile_elems) * tile_elems
    pad = padded - n
    flat_x = jnp.pad(flat_x, (0, pad))
    flat_y = jnp.pad(flat_y, (0, pad))
    rows = padded // _LANES

    x2 = flat_x.reshape(rows, _LANES)
    y2 = flat_y.reshape(rows, _LANES)
    grid = (rows // _TILE_ROWS,)

    loss = pl.pallas_call(
        functools.partial(_rmse_kernel, inv_n=1.0 / n, eps=float(eps)),
        out_shape=jax.ShapeDtypeStruct((1, 1), jnp.float32),
        grid=grid,
        in_specs=[
            pl.BlockSpec((_TILE_ROWS, _LANES), lambda i: (i, 0)),
            pl.BlockSpec((_TILE_ROWS, _LANES), lambda i: (i, 0)),
        ],
        # Same output block every step -> stays resident; written once at the end.
        out_specs=pl.BlockSpec((1, 1), lambda i: (0, 0)),
        scratch_shapes=[pltpu.VMEM((1, 1), jnp.float32)],
        compiler_params=pltpu.CompilerParams(
            dimension_semantics=("arbitrary",)  # sequential reduction axis
        ),
    )(x2, y2)
    return loss[0, 0]


class RMSELoss:
    """JAX/Pallas counterpart of the PyTorch RMSELoss module (no parameters)."""

    def __init__(self, eps=1e-6):
        self.eps = eps

    def __call__(self, yhat, y):
        return rmse_loss(yhat, y, eps=self.eps)


if __name__ == "__main__":
    key = jax.random.PRNGKey(0)
    k1, k2 = jax.random.split(key)
    # NCHW-style predictions and targets, matching the original module's usage.
    yhat = jax.random.normal(k1, (2, 4, 16, 16), dtype=jnp.float32)
    y = jax.random.normal(k2, (2, 4, 16, 16), dtype=jnp.float32)

    loss_fn = RMSELoss()
    out = loss_fn(yhat, y)
    jax.block_until_ready(out)

    ref = jnp.sqrt(jnp.mean((yhat - y) ** 2) + 1e-6)
    assert jnp.allclose(out, ref, rtol=1e-5, atol=1e-6), (out, ref)
    print("KERNEL_OK")
</pallas_src>

<mosaic_0001>
module attributes {stable_mosaic.version = 11 : i64} {
  func.func @_rmse_kernel(%arg0: i32, %arg1: memref<512x128xf32, #tpu.memory_space<vmem>>, %arg2: memref<512x128xf32, #tpu.memory_space<vmem>>, %arg3: memref<1x1xf32, #tpu.memory_space<vmem>>, %arg4: memref<1x1xf32, #tpu.memory_space<vmem>>) attributes {dimension_semantics = [#tpu.dimension_semantics<arbitrary>], iteration_bounds = array<i64: 1>, scalar_prefetch = 0 : i64, scratch_operands = 1 : i64, tpu.core_type = #tpu.core_type<tc>, window_params = [{transform_indices = @transform_0, window_bounds = array<i64: 512, 128>}, {transform_indices = @transform_1, window_bounds = array<i64: 512, 128>}, {pipeline_mode = #tpu.pipeline_mode<synchronous>, transform_indices = @transform_2, window_bounds = array<i64: 1, 1>}]} {
    %c0_i32 = arith.constant 0 : i32
    %0 = arith.cmpi eq, %arg0, %c0_i32 : i32
    %1 = arith.extui %0 : i1 to i32
    %c0_i32_0 = arith.constant 0 : i32
    %2 = arith.cmpi ne, %1, %c0_i32_0 : i32
    scf.if %2 {
      %cst_10 = arith.constant 0.000000e+00 : f32
      %18 = vector.broadcast %cst_10 : f32 to vector<1x1xf32>
      %c0_11 = arith.constant 0 : index
      %c0_12 = arith.constant 0 : index
      %19 = vector.load %arg4[%c0_11, %c0_12] : memref<1x1xf32, #tpu.memory_space<vmem>>, vector<1x1xf32>
      tpu.vector_store %arg4[%c0_11, %c0_12], %18 {strides = array<i32>} : memref<1x1xf32, #tpu.memory_space<vmem>>, vector<1x1xf32>,
    } else {
    }
    %c0 = arith.constant 0 : index
    %c0_1 = arith.constant 0 : index
    %3 = vector.load %arg1[%c0, %c0_1] : memref<512x128xf32, #tpu.memory_space<vmem>>, vector<512x128xf32>
    %c0_2 = arith.constant 0 : index
    %c0_3 = arith.constant 0 : index
    %4 = vector.load %arg2[%c0_2, %c0_3] : memref<512x128xf32, #tpu.memory_space<vmem>>, vector<512x128xf32>
    %5 = arith.subf %3, %4 : vector<512x128xf32>
    %c0_4 = arith.constant 0 : index
    %c0_5 = arith.constant 0 : index
    %6 = vector.load %arg4[%c0_4, %c0_5] : memref<1x1xf32, #tpu.memory_space<vmem>>, vector<1x1xf32>
    %7 = arith.mulf %5, %5 : vector<512x128xf32>
    %8 = vector.shape_cast %7 : vector<512x128xf32> to vector<1x512x128xf32>
    %cst = arith.constant dense<0.000000e+00> : vector<1xf32>
    %9 = vector.multi_reduction <add>, %8, %cst [1, 2] : vector<1x512x128xf32> to vector<1xf32>
    %10 = vector.shape_cast %9 : vector<1xf32> to vector<1x1x1xf32>
    %11 = vector.extract %10[0, 0, 0] : f32 from vector<1x1x1xf32>
    %12 = vector.broadcast %11 : f32 to vector<1x1xf32>
    %13 = arith.addf %6, %12 : vector<1x1xf32>
    %c0_6 = arith.constant 0 : index
    %c0_7 = arith.constant 0 : index
    %14 = vector.load %arg4[%c0_6, %c0_7] : memref<1x1xf32, #tpu.memory_space<vmem>>, vector<1x1xf32>
    tpu.vector_store %arg4[%c0_6, %c0_7], %13 {strides = array<i32>} : memref<1x1xf32, #tpu.memory_space<vmem>>, vector<1x1xf32>,
    %c0_i32_8 = arith.constant 0 : i32
    %15 = arith.cmpi eq, %arg0, %c0_i32_8 : i32
    %16 = arith.extui %15 : i1 to i32
    %c0_i32_9 = arith.constant 0 : i32
    %17 = arith.cmpi ne, %16, %c0_i32_9 : i32
    scf.if %17 {
      %c0_10 = arith.constant 0 : index
      %c0_11 = arith.constant 0 : index
      %18 = vector.load %arg4[%c0_10, %c0_11] : memref<1x1xf32, #tpu.memory_space<vmem>>, vector<1x1xf32>
      %cst_12 = arith.constant 4.8828125E-4 : f32
      %19 = vector.broadcast %cst_12 : f32 to vector<1x1xf32>
      %20 = arith.mulf %18, %19 : vector<1x1xf32>
      %cst_13 = arith.constant 9.99999997E-7 : f32
      %21 = vector.broadcast %cst_13 : f32 to vector<1x1xf32>
      %22 = arith.addf %20, %21 : vector<1x1xf32>
      %23 = math.sqrt %22 : vector<1x1xf32>
      %c0_14 = arith.constant 0 : index
      %c0_15 = arith.constant 0 : index
      %24 = vector.load %arg3[%c0_14, %c0_15] : memref<1x1xf32, #tpu.memory_space<vmem>>, vector<1x1xf32>
      tpu.vector_store %arg3[%c0_14, %c0_15], %23 {strides = array<i32>} : memref<1x1xf32, #tpu.memory_space<vmem>>, vector<1x1xf32>,
    } else {
    }
    return
  }
  func.func @transform_0(%arg0: i32) -> (i32, i32) {
    %c0_i32 = arith.constant 0 : i32
    %c0_i32_0 = arith.constant 0 : i32
    return %arg0, %c0_i32 : i32, i32
  }
  func.func @transform_1(%arg0: i32) -> (i32, i32) {
    %c0_i32 = arith.constant 0 : i32
    %c0_i32_0 = arith.constant 0 : i32
    return %arg0, %c0_i32 : i32, i32
  }
  func.func @transform_2(%arg0: i32) -> (i32, i32) {
    %c0_i32 = arith.constant 0 : i32
    %c0_i32_0 = arith.constant 0 : i32
    %c0_i32_1 = arith.constant 0 : i32
    return %c0_i32, %c0_i32_0 : i32, i32
  }
}

</mosaic_0001>

<llo_original>
// kernel: tpu_custom_call.1
$region0: #{tpu_custom_call.1}
  #allocation0 [shape = 'u32[]', space=smem, size = 0x4, offset = 0x4, fixed_abs, tag = 'smem constant byte address 0x4 - core index']
  #allocation1 [shape = 'u32[144,128]{1,0:T(1,128)}', space=vmem, size = 0x12000, scoped, tag = 'internal scratch']
  #allocation2 [shape = 'f32[1,1]{1,0:T(1,128)}', space=vmem, size = 0x200, scoped, tag = 'scratch operand']
  %s0 = inlined_call_operand.hbm [shape: f32[512,128], index: 0, kind: input, shape index: {}]
  %s1 = inlined_call_operand.hbm [shape: f32[512,128], index: 1, kind: input, shape index: {}]
  %s2 = inlined_call_operand.hbm [shape: f32[1,1], index: 2, kind: output, shape index: {}]
  %s3 = sld [smem:[#allocation0]]
  $region34: #{tpu_custom_call.1} parent=0
    _
  %s5 = ssub.s32 1, %s3
  %s6 = scalar_select 0, %s5, %s3
  $region1: #{tpu_custom_call.1} parent=0
    #allocation3 [shape = 'u8[262144]{0}', space=vmem, size = 0x40000, scoped, tag = 'input window, operand 0, single buffered']
    #allocation4 [shape = 's32[1]{0}', space=sflag, size = 0x4, scoped, tag = 'scoped memory for tpu_custom_call.1']
    #allocation5 [shape = 's32[1]{0}', space=sflag, size = 0x4, scoped, tag = 'scoped memory for tpu_custom_call.1']
    #allocation6 [shape = 'u8[262144]{0}', space=vmem, size = 0x40000, scoped, tag = 'input window, operand 1, single buffered']
    #allocation7 [shape = 's32[1]{0}', space=sflag, size = 0x4, scoped, tag = 'scoped memory for tpu_custom_call.1']
    #allocation8 [shape = 'u8[512]{0}', space=vmem, size = 0x400, scoped, tag = 'output window, operand 0, single buffered']
    %7 = vsyncpa [#allocation4], 0
    %8 = vsyncpa [#allocation7], 0
    %9 = vsyncpa [#allocation5], 0
    // Predicated region
    $region2: #{tpu_custom_call.1} parent=1 // pred_check
      _
    $region3: #{tpu_custom_call.1} parent=1 // pred_check_branch
      %11 = sbr.rel (0) target = $region5
    $region4: #{tpu_custom_call.1} parent=1 // pred_region
      %s13 = ssub.s32 8192, 8192
      %14 = vsyncadd [#allocation4], %s13
      %s15 = sshll.u32 [#allocation3], 4
      %s16 = int_to_ptr.vmem [resolvable:$true] %s15
      %21 = dma.hbm_to_vmem [thread:$0]  %s0, 8192, %s16, [#allocation4], 128, 128, 8
    $region5: #{tpu_custom_call.1} parent=1 // pred_fallthru
      _
    // Predicated region
    $region6: #{tpu_custom_call.1} parent=1 // pred_check
      _
    $region7: #{tpu_custom_call.1} parent=1 // pred_check_branch
      %23 = sbr.rel (0) target = $region9
    $region8: #{tpu_custom_call.1} parent=1 // pred_region
      %s25 = ssub.s32 8192, 8192
      %26 = vsyncadd [#allocation7], %s25
      %s27 = sshll.u32 [#allocation6], 4
      %s28 = int_to_ptr.vmem [resolvable:$true] %s27
      %33 = dma.hbm_to_vmem [thread:$0]  %s1, 8192, %s28, [#allocation7], 128, 128, 8
    $region9: #{tpu_custom_call.1} parent=1 // pred_fallthru
      _
    // Predicated region
    $region10: #{tpu_custom_call.1} parent=1 // pred_check
      _
    $region11: #{tpu_custom_call.1} parent=1 // pred_check_branch
      %35 = sbr.rel (0) target = $region13
    $region12: #{tpu_custom_call.1} parent=1 // pred_region
      %36 = dma.done [#allocation4], 8192
    $region13: #{tpu_custom_call.1} parent=1 // pred_fallthru
      _
    // Predicated region
    $region14: #{tpu_custom_call.1} parent=1 // pred_check
      _
    $region15: #{tpu_custom_call.1} parent=1 // pred_check_branch
      %38 = sbr.rel (0) target = $region17
    $region16: #{tpu_custom_call.1} parent=1 // pred_region
      %39 = dma.done [#allocation7], 8192
    $region17: #{tpu_custom_call.1} parent=1 // pred_fallthru
      _
    %p40 = scmp.eq.s32.totalorder 0, 0
    // Predicated region
    $region18: #{tpu_custom_call.1} parent=1 // pred_check
      %p41 = pneg %p40
    $region19: #{tpu_custom_call.1} parent=1 // pred_check_branch
      %43 = sbr.rel (%p41) target = $region21
    $region20: #{tpu_custom_call.1} parent=1 // pred_region
      %vm44 = vcmask 0
      %45 = vst.msk [vmem:[#allocation2] sm:$0x1] %vm44, 0.0
    $region21: #{tpu_custom_call.1} parent=1 // pred_fallthru
      _
    %v46 = vld [vmem:[#allocation3] sm:$0xff]
    %v47 = vld [vmem:[#allocation3 + $0x8] sm:$0xff]
    %v48 = vld [vmem:[#allocation3 + $0x10] sm:$0xff]
    %v49 = vld [vmem:[#allocation3 + $0x18] sm:$0xff]
    %v50 = vld [vmem:[#allocation3 + $0x20] sm:$0xff]
    %v51 = vld [vmem:[#allocation3 + $0x28] sm:$0xff]
    %v52 = vld [vmem:[#allocation3 + $0x30] sm:$0xff]
    %v53 = vld [vmem:[#allocation3 + $0x38] sm:$0xff]
    %v54 = vld [vmem:[#allocation3 + $0x40] sm:$0xff]
    %v55 = vld [vmem:[#allocation3 + $0x48] sm:$0xff]
    %v56 = vld [vmem:[#allocation3 + $0x50] sm:$0xff]
    %v57 = vld [vmem:[#allocation3 + $0x58] sm:$0xff]
    %v58 = vld [vmem:[#allocation3 + $0x60] sm:$0xff]
    %v59 = vld [vmem:[#allocation3 + $0x68] sm:$0xff]
    %v60 = vld [vmem:[#allocation3 + $0x70] sm:$0xff]
    %v61 = vld [vmem:[#allocation3 + $0x78] sm:$0xff]
    %v62 = vld [vmem:[#allocation3 + $0x80] sm:$0xff]
    %v63 = vld [vmem:[#allocation3 + $0x88] sm:$0xff]
    %v64 = vld [vmem:[#allocation3 + $0x90] sm:$0xff]
    %v65 = vld [vmem:[#allocation3 + $0x98] sm:$0xff]
    %v66 = vld [vmem:[#allocation3 + $0xa0] sm:$0xff]
    %v67 = vld [vmem:[#allocation3 + $0xa8] sm:$0xff]
    %v68 = vld [vmem:[#allocation3 + $0xb0] sm:$0xff]
    %v69 = vld [vmem:[#allocation3 + $0xb8] sm:$0xff]
    %v70 = vld [vmem:[#allocation3 + $0xc0] sm:$0xff]
    %v71 = vld [vmem:[#allocation3 + $0xc8] sm:$0xff]
    %v72 = vld [vmem:[#allocation3 + $0xd0] sm:$0xff]
    %v73 = vld [vmem:[#allocation3 + $0xd8] sm:$0xff]
    %v74 = vld [vmem:[#allocation3 + $0xe0] sm:$0xff]
    %v75 = vld [vmem:[#allocation3 + $0xe8] sm:$0xff]
    %v76 = vld [vmem:[#allocation3 + $0xf0] sm:$0xff]
    %v77 = vld [vmem:[#allocation3 + $0xf8] sm:$0xff]
    %v78 = vld [vmem:[#allocation3 + $0x100] sm:$0xff]
    %v79 = vld [vmem:[#allocation3 + $0x108] sm:$0xff]
    %v80 = vld [vmem:[#allocation3 + $0x110] sm:$0xff]
    %v81 = vld [vmem:[#allocation3 + $0x118] sm:$0xff]
    %v82 = vld [vmem:[#allocation3 + $0x120] sm:$0xff]
    %v83 = vld [vmem:[#allocation3 + $0x128] sm:$0xff]
    %v84 = vld [vmem:[#allocation3 + $0x130] sm:$0xff]
    %v85 = vld [vmem:[#allocation3 + $0x138] sm:$0xff]
    %v86 = vld [vmem:[#allocation3 + $0x140] sm:$0xff]
    %v87 = vld [vmem:[#allocation3 + $0x148] sm:$0xff]
    %v88 = vld [vmem:[#allocation3 + $0x150] sm:$0xff]
    %v89 = vld [vmem:[#allocation3 + $0x158] sm:$0xff]
    %v90 = vld [vmem:[#allocation3 + $0x160] sm:$0xff]
    %v91 = vld [vmem:[#allocation3 + $0x168] sm:$0xff]
    %v92 = vld [vmem:[#allocation3 + $0x170] sm:$0xff]
    %v93 = vld [vmem:[#allocation3 + $0x178] sm:$0xff]
    %v94 = vld [vmem:[#allocation3 + $0x180] sm:$0xff]
    %v95 = vld [vmem:[#allocation3 + $0x188] sm:$0xff]
    %v96 = vld [vmem:[#allocation3 + $0x190] sm:$0xff]
    %v97 = vld [vmem:[#allocation3 + $0x198] sm:$0xff]
    %v98 = vld [vmem:[#allocation3 + $0x1a0] sm:$0xff]
    %v99 = vld [vmem:[#allocation3 + $0x1a8] sm:$0xff]
    %v100 = vld [vmem:[#allocation3 + $0x1b0] sm:$0xff]
    %v101 = vld [vmem:[#allocation3 + $0x1b8] sm:$0xff]
    %v102 = vld [vmem:[#allocation3 + $0x1c0] sm:$0xff]
    %v103 = vld [vmem:[#allocation3 + $0x1c8] sm:$0xff]
    %v104 = vld [vmem:[#allocation3 + $0x1d0] sm:$0xff]
    %v105 = vld [vmem:[#allocation3 + $0x1d8] sm:$0xff]
    %v106 = vld [vmem:[#allocation3 + $0x1e0] sm:$0xff]
    %v107 = vld [vmem:[#allocation3 + $0x1e8] sm:$0xff]
    %v108 = vld [vmem:[#allocation3 + $0x1f0] sm:$0xff]
    %v109 = vld [vmem:[#allocation3 + $0x1f8] sm:$0xff]
    %v110 = vld [vmem:[#allocation6] sm:$0xff]
    %v111 = vld [vmem:[#allocation6 + $0x8] sm:$0xff]
    %v112 = vld [vmem:[#allocation6 + $0x10] sm:$0xff]
    %v113 = vld [vmem:[#allocation6 + $0x18] sm:$0xff]
    %v114 = vld [vmem:[#allocation6 + $0x20] sm:$0xff]
    %v115 = vld [vmem:[#allocation6 + $0x28] sm:$0xff]
    %v116 = vld [vmem:[#allocation6 + $0x30] sm:$0xff]
    %v117 = vld [vmem:[#allocation6 + $0x38] sm:$0xff]
    %v118 = vld [vmem:[#allocation6 + $0x40] sm:$0xff]
    %v119 = vld [vmem:[#allocation6 + $0x48] sm:$0xff]
    %v120 = vld [vmem:[#allocation6 + $0x50] sm:$0xff]
    %v121 = vld [vmem:[#allocation6 + $0x58] sm:$0xff]
    %v122 = vld [vmem:[#allocation6 + $0x60] sm:$0xff]
    %v123 = vld [vmem:[#allocation6 + $0x68] sm:$0xff]
    %v124 = vld [vmem:[#allocation6 + $0x70] sm:$0xff]
    %v125 = vld [vmem:[#allocation6 + $0x78] sm:$0xff]
    %v126 = vld [vmem:[#allocation6 + $0x80] sm:$0xff]
    %v127 = vld [vmem:[#allocation6 + $0x88] sm:$0xff]
    %v128 = vld [vmem:[#allocation6 + $0x90] sm:$0xff]
    %v129 = vld [vmem:[#allocation6 + $0x98] sm:$0xff]
    %v130 = vld [vmem:[#allocation6 + $0xa0] sm:$0xff]
    %v131 = vld [vmem:[#allocation6 + $0xa8] sm:$0xff]
    %v132 = vld [vmem:[#allocation6 + $0xb0] sm:$0xff]
    %v133 = vld [vmem:[#allocation6 + $0xb8] sm:$0xff]
    %v134 = vld [vmem:[#allocation6 + $0xc0] sm:$0xff]
    %v135 = vld [vmem:[#allocation6 + $0xc8] sm:$0xff]
    %v136 = vld [vmem:[#allocation6 + $0xd0] sm:$0xff]
    %v137 = vld [vmem:[#allocation6 + $0xd8] sm:$0xff]
    %v138 = vld [vmem:[#allocation6 + $0xe0] sm:$0xff]
    %v139 = vld [vmem:[#allocation6 + $0xe8] sm:$0xff]
    %v140 = vld [vmem:[#allocation6 + $0xf0] sm:$0xff]
    %v141 = vld [vmem:[#allocation6 + $0xf8] sm:$0xff]
    %v142 = vld [vmem:[#allocation6 + $0x100] sm:$0xff]
    %v143 = vld [vmem:[#allocation6 + $0x108] sm:$0xff]
    %v144 = vld [vmem:[#allocation6 + $0x110] sm:$0xff]
    %v145 = vld [vmem:[#allocation6 + $0x118] sm:$0xff]
    %v146 = vld [vmem:[#allocation6 + $0x120] sm:$0xff]
    %v147 = vld [vmem:[#allocation6 + $0x128] sm:$0xff]
    %v148 = vld [vmem:[#allocation6 + $0x130] sm:$0xff]
    %v149 = vld [vmem:[#allocation6 + $0x138] sm:$0xff]
    %v150 = vld [vmem:[#allocation6 + $0x140] sm:$0xff]
    %v151 = vld [vmem:[#allocation6 + $0x148] sm:$0xff]
    %v152 = vld [vmem:[#allocation6 + $0x150] sm:$0xff]
    %v153 = vld [vmem:[#allocation6 + $0x158] sm:$0xff]
    %v154 = vld [vmem:[#allocation6 + $0x160] sm:$0xff]
    %v155 = vld [vmem:[#allocation6 + $0x168] sm:$0xff]
    %v156 = vld [vmem:[#allocation6 + $0x170] sm:$0xff]
    %v157 = vld [vmem:[#allocation6 + $0x178] sm:$0xff]
    %v158 = vld [vmem:[#allocation6 + $0x180] sm:$0xff]
    %v159 = vld [vmem:[#allocation6 + $0x188] sm:$0xff]
    %v160 = vld [vmem:[#allocation6 + $0x190] sm:$0xff]
    %v161 = vld [vmem:[#allocation6 + $0x198] sm:$0xff]
    %v162 = vld [vmem:[#allocation6 + $0x1a0] sm:$0xff]
    %v163 = vld [vmem:[#allocation6 + $0x1a8] sm:$0xff]
    %v164 = vld [vmem:[#allocation6 + $0x1b0] sm:$0xff]
    %v165 = vld [vmem:[#allocation6 + $0x1b8] sm:$0xff]
    %v166 = vld [vmem:[#allocation6 + $0x1c0] sm:$0xff]
    %v167 = vld [vmem:[#allocation6 + $0x1c8] sm:$0xff]
    %v168 = vld [vmem:[#allocation6 + $0x1d0] sm:$0xff]
    %v169 = vld [vmem:[#allocation6 + $0x1d8] sm:$0xff]
    %v170 = vld [vmem:[#allocation6 + $0x1e0] sm:$0xff]
    %v171 = vld [vmem:[#allocation6 + $0x1e8] sm:$0xff]
    %v172 = vld [vmem:[#allocation6 + $0x1f0] sm:$0xff]
    %v173 = vld [vmem:[#allocation6 + $0x1f8] sm:$0xff]
    %v174 = vsub.f32 %v46, %v110
    %v175 = vsub.f32 %v47, %v111
    %v176 = vsub.f32 %v48, %v112
    %v177 = vsub.f32 %v49, %v113
    %v178 = vsub.f32 %v50, %v114
    %v179 = vsub.f32 %v51, %v115
    %v180 = vsub.f32 %v52, %v116
    %v181 = vsub.f32 %v53, %v117
    %v182 = vsub.f32 %v54, %v118
    %v183 = vsub.f32 %v55, %v119
    %v184 = vsub.f32 %v56, %v120
    %v185 = vsub.f32 %v57, %v121
    %v186 = vsub.f32 %v58, %v122
    %v187 = vsub.f32 %v59, %v123
    %v188 = vsub.f32 %v60, %v124
    %v189 = vsub.f32 %v61, %v125
    %v190 = vsub.f32 %v62, %v126
    %v191 = vsub.f32 %v63, %v127
    %v192 = vsub.f32 %v64, %v128
    %v193 = vsub.f32 %v65, %v129
    %v194 = vsub.f32 %v66, %v130
    %v195 = vsub.f32 %v67, %v131
    %v196 = vsub.f32 %v68, %v132
    %v197 = vsub.f32 %v69, %v133
    %v198 = vsub.f32 %v70, %v134
    %v199 = vsub.f32 %v71, %v135
    %v200 = vsub.f32 %v72, %v136
    %v201 = vsub.f32 %v73, %v137
    %v202 = vsub.f32 %v74, %v138
    %v203 = vsub.f32 %v75, %v139
    %v204 = vsub.f32 %v76, %v140
    %v205 = vsub.f32 %v77, %v141
    %v206 = vsub.f32 %v78, %v142
    %v207 = vsub.f32 %v79, %v143
    %v208 = vsub.f32 %v80, %v144
    %v209 = vsub.f32 %v81, %v145
    %v210 = vsub.f32 %v82, %v146
    %v211 = vsub.f32 %v83, %v147
    %v212 = vsub.f32 %v84, %v148
    %v213 = vsub.f32 %v85, %v149
    %v214 = vsub.f32 %v86, %v150
    %v215 = vsub.f32 %v87, %v151
    %v216 = vsub.f32 %v88, %v152
    %v217 = vsub.f32 %v89, %v153
    %v218 = vsub.f32 %v90, %v154
    %v219 = vsub.f32 %v91, %v155
    %v220 = vsub.f32 %v92, %v156
    %v221 = vsub.f32 %v93, %v157
    %v222 = vsub.f32 %v94, %v158
    %v223 = vsub.f32 %v95, %v159
    %v224 = vsub.f32 %v96, %v160
    %v225 = vsub.f32 %v97, %v161
    %v226 = vsub.f32 %v98, %v162
    %v227 = vsub.f32 %v99, %v163
    %v228 = vsub.f32 %v100, %v164
    %v229 = vsub.f32 %v101, %v165
    %v230 = vsub.f32 %v102, %v166
    %v231 = vsub.f32 %v103, %v167
    %v232 = vsub.f32 %v104, %v168
    %v233 = vsub.f32 %v105, %v169
    %v234 = vsub.f32 %v106, %v170
    %v235 = vsub.f32 %v107, %v171
    %v236 = vsub.f32 %v108, %v172
    %v237 = vsub.f32 %v109, %v173
    %v238 = vld [vmem:[#allocation2] sm:$0x1]
    %v239 = vmul.f32 %v174, %v174
    %v240 = vmul.f32 %v175, %v175
    %v241 = vmul.f32 %v176, %v176
    %v242 = vmul.f32 %v177, %v177
    %v243 = vmul.f32 %v178, %v178
    %v244 = vmul.f32 %v179, %v179
    %v245 = vmul.f32 %v180, %v180
    %v246 = vmul.f32 %v181, %v181
    %v247 = vmul.f32 %v182, %v182
    %v248 = vmul.f32 %v183, %v183
    %v249 = vmul.f32 %v184, %v184
    %v250 = vmul.f32 %v185, %v185
    %v251 = vmul.f32 %v186, %v186
    %v252 = vmul.f32 %v187, %v187
    %v253 = vmul.f32 %v188, %v188
    %v254 = vmul.f32 %v189, %v189
    %v255 = vmul.f32 %v190, %v190
    %v256 = vmul.f32 %v191, %v191
    %v257 = vmul.f32 %v192, %v192
    %v258 = vmul.f32 %v193, %v193
    %v259 = vmul.f32 %v194, %v194
    %v260 = vmul.f32 %v195, %v195
    %v261 = vmul.f32 %v196, %v196
    %v262 = vmul.f32 %v197, %v197
    %v263 = vmul.f32 %v198, %v198
    %v264 = vmul.f32 %v199, %v199
    %v265 = vmul.f32 %v200, %v200
    %v266 = vmul.f32 %v201, %v201
    %v267 = vmul.f32 %v202, %v202
    %v268 = vmul.f32 %v203, %v203
    %v269 = vmul.f32 %v204, %v204
    %v270 = vmul.f32 %v205, %v205
    %v271 = vmul.f32 %v206, %v206
    %v272 = vmul.f32 %v207, %v207
    %v273 = vmul.f32 %v208, %v208
    %v274 = vmul.f32 %v209, %v209
    %v275 = vmul.f32 %v210, %v210
    %v276 = vmul.f32 %v211, %v211
    %v277 = vmul.f32 %v212, %v212
    %v278 = vmul.f32 %v213, %v213
    %v279 = vmul.f32 %v214, %v214
    %v280 = vmul.f32 %v215, %v215
    %v281 = vmul.f32 %v216, %v216
    %v282 = vmul.f32 %v217, %v217
    %v283 = vmul.f32 %v218, %v218
    %v284 = vmul.f32 %v219, %v219
    %v285 = vmul.f32 %v220, %v220
    %v286 = vmul.f32 %v221, %v221
    %v287 = vmul.f32 %v222, %v222
    %v288 = vmul.f32 %v223, %v223
    %v289 = vmul.f32 %v224, %v224
    %v290 = vmul.f32 %v225, %v225
    %v291 = vmul.f32 %v226, %v226
    %v292 = vmul.f32 %v227, %v227
    %v293 = vmul.f32 %v228, %v228
    %v294 = vmul.f32 %v229, %v229
    %v295 = vmul.f32 %v230, %v230
    %v296 = vmul.f32 %v231, %v231
    %v297 = vmul.f32 %v232, %v232
    %v298 = vmul.f32 %v233, %v233
    %v299 = vmul.f32 %v234, %v234
    %v300 = vmul.f32 %v235, %v235
    %v301 = vmul.f32 %v236, %v236
    %v302 = vmul.f32 %v237, %v237
    %v303 = vadd.f32 %v239, %v240
    %v304 = vadd.f32 %v303, %v241
    %v305 = vadd.f32 %v304, %v242
    %v306 = vadd.f32 %v305, %v243
    %v307 = vadd.f32 %v306, %v244
    %v308 = vadd.f32 %v307, %v245
    %v309 = vadd.f32 %v308, %v246
    %v310 = vadd.f32 %v309, %v247
    %v311 = vadd.f32 %v310, %v248
    %v312 = vadd.f32 %v311, %v249
    %v313 = vadd.f32 %v312, %v250
    %v314 = vadd.f32 %v313, %v251
    %v315 = vadd.f32 %v314, %v252
    %v316 = vadd.f32 %v315, %v253
    %v317 = vadd.f32 %v316, %v254
    %v318 = vadd.f32 %v317, %v255
    %v319 = vadd.f32 %v318, %v256
    %v320 = vadd.f32 %v319, %v257
    %v321 = vadd.f32 %v320, %v258
    %v322 = vadd.f32 %v321, %v259
    %v323 = vadd.f32 %v322, %v260
    %v324 = vadd.f32 %v323, %v261
    %v325 = vadd.f32 %v324, %v262
    %v326 = vadd.f32 %v325, %v263
    %v327 = vadd.f32 %v326, %v264
    %v328 = vadd.f32 %v327, %v265
    %v329 = vadd.f32 %v328, %v266
    %v330 = vadd.f32 %v329, %v267
    %v331 = vadd.f32 %v330, %v268
    %v332 = vadd.f32 %v331, %v269
    %v333 = vadd.f32 %v332, %v270
    %v334 = vadd.f32 %v333, %v271
    %v335 = vadd.f32 %v334, %v272
    %v336 = vadd.f32 %v335, %v273
    %v337 = vadd.f32 %v336, %v274
    %v338 = vadd.f32 %v337, %v275
    %v339 = vadd.f32 %v338, %v276
    %v340 = vadd.f32 %v339, %v277
    %v341 = vadd.f32 %v340, %v278
    %v342 = vadd.f32 %v341, %v279
    %v343 = vadd.f32 %v342, %v280
    %v344 = vadd.f32 %v343, %v281
    %v345 = vadd.f32 %v344, %v282
    %v346 = vadd.f32 %v345, %v283
    %v347 = vadd.f32 %v346, %v284
    %v348 = vadd.f32 %v347, %v285
    %v349 = vadd.f32 %v348, %v286
    %v350 = vadd.f32 %v349, %v287
    %v351 = vadd.f32 %v350, %v288
    %v352 = vadd.f32 %v351, %v289
    %v353 = vadd.f32 %v352, %v290
    %v354 = vadd.f32 %v353, %v291
    %v355 = vadd.f32 %v354, %v292
    %v356 = vadd.f32 %v355, %v293
    %v357 = vadd.f32 %v356, %v294
    %v358 = vadd.f32 %v357, %v295
    %v359 = vadd.f32 %v358, %v296
    %v360 = vadd.f32 %v359, %v297
    %v361 = vadd.f32 %v360, %v298
    %v362 = vadd.f32 %v361, %v299
    %v363 = vadd.f32 %v362, %v300
    %v364 = vadd.f32 %v363, %v301
    %v365 = vadd.f32 %v364, %v302
    %366 = vadd.xlane.f32.xlu0 %v365
    %v367 = vpop.xlane.xlu0 %366
    %v368 = vrot.slane %v367, 4
    %v369 = vadd.f32 %v367, %v368
    %v370 = vrot.slane %v369, 2
    %v371 = vadd.f32 %v369, %v370
    %v372 = vrot.slane %v371, 1
    %v373 = vadd.f32 %v371, %v372
    %s374 = vtos %v373
    %v375 = vstv %s374
    %v376 = vadd.f32 %v238, %v375
    %vm377 = vcmask 0
    %378 = vst.msk [vmem:[#allocation2] sm:$0x1] %vm377, %v376
    // Predicated region
    $region22: #{tpu_custom_call.1} parent=1 // pred_check
      %p379 = pneg %p40
    $region23: #{tpu_custom_call.1} parent=1 // pred_check_branch
      %381 = sbr.rel (%p379) target = $region25
    $region24: #{tpu_custom_call.1} parent=1 // pred_region
      %v382 = vld [vmem:[#allocation2] sm:$0x1]
      %v383 = vmul.f32 %v382, 0.00048828125
      %v384 = vadd.f32 %v383, 1e-06
      %v385 = vrsqrt.pop %v384
      %v386 = vmul.f32 %v384, %v385
      %vm387 = vcmp.eq.f32.partialorder %v384, inf
      %v388 = vsel %vm387, %v384, %v386
      %vm389 = vcmp.eq.f32.partialorder %v384, 0.0
      %v390 = vand.u32 %v384, 2147483648
      %v391 = vsel %vm389, %v390, %v388
      %392 = vst.msk [vmem:[#allocation8] sm:$0x1] %vm377, %v391
    $region25: #{tpu_custom_call.1} parent=1 // pred_fallthru
      _
    // Predicated region
    $region26: #{tpu_custom_call.1} parent=1 // pred_check
      _
    $region27: #{tpu_custom_call.1} parent=1 // pred_check_branch
      %394 = sbr.rel (0) target = $region29
    $region28: #{tpu_custom_call.1} parent=1 // pred_region
      %s396 = ssub.s32 16, 16
      %397 = vsyncadd [#allocation5], %s396
      %s399 = sshll.u32 [#allocation8], 4
      %s400 = int_to_ptr.vmem [resolvable:$true] %s399
      %402 = dma.vmem_to_hbm [thread:$0]  %s400, 16, %s2, [#allocation5]
    $region29: #{tpu_custom_call.1} parent=1 // pred_fallthru
      _
    // Predicated region
    $region30: #{tpu_custom_call.1} parent=1 // pred_check
      _
    $region31: #{tpu_custom_call.1} parent=1 // pred_check_branch
      %404 = sbr.rel (0) target = $region33
    $region32: #{tpu_custom_call.1} parent=1 // pred_region
      %405 = dma.done [#allocation5], 16
    $region33: #{tpu_custom_call.1} parent=1 // pred_fallthru
      _
    %406 = vsyncpa [#allocation4], 1
    %407 = vsyncpa [#allocation7], 1
    %408 = vsyncpa [#allocation5], 1

</llo_original>
